<compile_context>
chip_gen: v6e
topology: v6e:2x2x1
jax: 0.10.0
libtpu: 0.0.40
codegen_flags: <defaults>
</compile_context>

<pallas_src>
import functools

import jax
import jax.numpy as jnp
from jax.experimental import pallas as pl
from jax.experimental.pallas import tpu as pltpu


def _mlp_kernel(x_ref, w1_ref, b1_ref, w2_ref, b2_ref, w3_ref, b3_ref, o_ref):
    """Fused MLP hot path: 3 MXU matmuls + VPU bias-add / tanh."""
    x = x_ref[...]
    h1 = jnp.tanh(
        jnp.dot(x, w1_ref[...], preferred_element_type=jnp.float32) + b1_ref[...]
    )
    h2 = jnp.tanh(
        jnp.dot(h1, w2_ref[...], preferred_element_type=jnp.float32) + b2_ref[...]
    )
    out = jnp.dot(h2, w3_ref[...], preferred_element_type=jnp.float32) + b3_ref[...]
    o_ref[...] = out.astype(o_ref.dtype)


def _round_up(n, m):
    return ((n + m - 1) // m) * m


# Split into >=2 grid steps only when each half-tile is at least this many rows.
# (Guarantees both v7x TensorCores get work once the batch is big enough to
#  matter; tiny batches stay single-step to avoid pointless per-step overhead.)
_SPLIT_MIN = 256


def prepare_params(params):
    """One-time transform (call OUTSIDE the jitted forward): lane-pad the output
    head to a multiple of 128 so the kernel epilogue uses full-vreg stores.
    Returns (padded_params, act_dim)."""
    act_dim = params["w3"].shape[1]
    act_pad = _round_up(max(act_dim, 128), 128)
    p = dict(params)
    if act_pad != act_dim:
        p["w3"] = jnp.pad(params["w3"], ((0, 0), (0, act_pad - act_dim)))
        p["b3"] = jnp.pad(params["b3"], ((0, 0), (0, act_pad - act_dim)))
    return p, act_dim


@functools.partial(jax.jit, static_argnames=("act_dim", "block_b"))
def causal_q_critic_forward(x, padded_params, act_dim, block_b=1024):
    """x: (B, obs_dim) float32. padded_params: output of prepare_params()."""
    B, obs_dim = x.shape
    hidden = padded_params["w1"].shape[1]
    act_pad = padded_params["w3"].shape[1]

    # ---- batch tiling --------------------------------------------------------
    b_sub = _round_up(B, 8)  # sublane alignment
    if b_sub <= block_b:
        if b_sub >= 2 * _SPLIT_MIN:
            # Two grid steps -> both v7x TensorCores get a tile.
            bb = _round_up(-(-b_sub // 2), 8)
        else:
            bb = b_sub  # whole batch in a single grid step (launch-bound regime)
    else:
        bb = block_b  # large batches: 1024-row tiles (~86% of HBM roofline)
    b_pad = _round_up(b_sub, bb)
    if b_pad != B:
        x = jnp.pad(x, ((0, b_pad - B), (0, 0)))
    grid_steps = b_pad // bb

    # Grid-invariant weights/biases: constant index_map keeps them resident in
    # VMEM across grid steps under the default pipeline (no per-step re-DMA).
    in_specs = [
        pl.BlockSpec((bb, obs_dim), lambda i: (i, 0)),    # x tile (streams)
        pl.BlockSpec((obs_dim, hidden), lambda i: (0, 0)),  # w1
        pl.BlockSpec((1, hidden), lambda i: (0, 0)),        # b1
        pl.BlockSpec((hidden, hidden), lambda i: (0, 0)),   # w2
        pl.BlockSpec((1, hidden), lambda i: (0, 0)),        # b2
        pl.BlockSpec((hidden, act_pad), lambda i: (0, 0)),  # w3 (lane-padded)
        pl.BlockSpec((1, act_pad), lambda i: (0, 0)),       # b3 (lane-padded)
    ]
    out_spec = pl.BlockSpec((bb, act_pad), lambda i: (i, 0))

    out = pl.pallas_call(
        _mlp_kernel,
        out_shape=jax.ShapeDtypeStruct((b_pad, act_pad), jnp.float32),
        grid=(grid_steps,),
        in_specs=in_specs,
        out_specs=out_spec,
        compiler_params=pltpu.CompilerParams(
            # Independent batch tiles -> shard across TensorCores on v7x.
            dimension_semantics=("parallel",),
        ),
    )(
        x,
        padded_params["w1"], padded_params["b1"],
        padded_params["w2"], padded_params["b2"],
        padded_params["w3"], padded_params["b3"],
    )

    return out[:B, :act_dim]


def init_params(key, obs_dim, act_dim, hidden):
    """Deterministic init mimicking torch.nn.Linear default (U[-1/sqrt(fan_in), 1/sqrt(fan_in)]).
    Weights are stored as (in_features, out_features)."""
    ks = jax.random.split(key, 6)

    def linear(kw, kb, fan_in, fan_out):
        bound = 1.0 / jnp.sqrt(float(fan_in))
        w = jax.random.uniform(kw, (fan_in, fan_out), jnp.float32, -bound, bound)
        b = jax.random.uniform(kb, (1, fan_out), jnp.float32, -bound, bound)
        return w, b

    w1, b1 = linear(ks[0], ks[1], obs_dim, hidden)
    w2, b2 = linear(ks[2], ks[3], hidden, hidden)
    w3, b3 = linear(ks[4], ks[5], hidden, act_dim)
    return {"w1": w1, "b1": b1, "w2": w2, "b2": b2, "w3": w3, "b3": b3}


def _reference_forward(x, p):
    h1 = jnp.tanh(x @ p["w1"] + p["b1"])
    h2 = jnp.tanh(h1 @ p["w2"] + p["b2"])
    return h2 @ p["w3"] + p["b3"]


if __name__ == "__main__":
    # Small shapes consistent with the module: batch of observations -> Q-values
    # per action, with the module's default hidden=128.
    B, obs_dim, act_dim, hidden = 16, 32, 8, 128

    key = jax.random.PRNGKey(0)
    kx, kp = jax.random.split(key)
    x = jax.random.normal(kx, (B, obs_dim), jnp.float32)
    params = init_params(kp, obs_dim, act_dim, hidden)

    # One-time head padding / layout prep (outside the jitted forward).
    padded_params, act_dim_inferred = prepare_params(params)

    q_values = causal_q_critic_forward(x, padded_params, act_dim_inferred)
    q_values = jax.block_until_ready(q_values)

    ref = _reference_forward(x, params)
    assert q_values.shape == (B, act_dim)
    assert jnp.allclose(q_values, ref, atol=1e-4, rtol=1e-4), "mismatch vs reference"

    print("KERNEL_OK")
</pallas_src>

<mosaic_0001>
module attributes {stable_mosaic.version = 11 : i64} {
  func.func @_mlp_kernel(%arg0: i32, %arg1: memref<16x32xf32, #tpu.memory_space<vmem>>, %arg2: memref<32x128xf32, #tpu.memory_space<vmem>>, %arg3: memref<1x128xf32, #tpu.memory_space<vmem>>, %arg4: memref<128x128xf32, #tpu.memory_space<vmem>>, %arg5: memref<1x128xf32, #tpu.memory_space<vmem>>, %arg6: memref<128x128xf32, #tpu.memory_space<vmem>>, %arg7: memref<1x128xf32, #tpu.memory_space<vmem>>, %arg8: memref<16x128xf32, #tpu.memory_space<vmem>>) attributes {dimension_semantics = [#tpu.dimension_semantics<parallel>], iteration_bounds = array<i64: 1>, scalar_prefetch = 0 : i64, scratch_operands = 0 : i64, tpu.core_type = #tpu.core_type<tc>, window_params = [{transform_indices = @transform_0, window_bounds = array<i64: 16, 32>}, {pipeline_mode = #tpu.pipeline_mode<synchronous>, transform_indices = @transform_1, window_bounds = array<i64: 32, 128>}, {pipeline_mode = #tpu.pipeline_mode<synchronous>, transform_indices = @transform_2, window_bounds = array<i64: 1, 128>}, {pipeline_mode = #tpu.pipeline_mode<synchronous>, transform_indices = @transform_3, window_bounds = array<i64: 128, 128>}, {pipeline_mode = #tpu.pipeline_mode<synchronous>, transform_indices = @transform_4, window_bounds = array<i64: 1, 128>}, {pipeline_mode = #tpu.pipeline_mode<synchronous>, transform_indices = @transform_5, window_bounds = array<i64: 128, 128>}, {pipeline_mode = #tpu.pipeline_mode<synchronous>, transform_indices = @transform_6, window_bounds = array<i64: 1, 128>}, {transform_indices = @transform_7, window_bounds = array<i64: 16, 128>}]} {
    %c0 = arith.constant 0 : index
    %c0_0 = arith.constant 0 : index
    %0 = vector.load %arg1[%c0, %c0_0] : memref<16x32xf32, #tpu.memory_space<vmem>>, vector<16x32xf32>
    %c0_1 = arith.constant 0 : index
    %c0_2 = arith.constant 0 : index
    %1 = vector.load %arg2[%c0_1, %c0_2] : memref<32x128xf32, #tpu.memory_space<vmem>>, vector<32x128xf32>
    %cst = arith.constant dense<0.000000e+00> : vector<16x128xf32>
    %2 = tpu.matmul %0, %1, %cst {dimension_numbers = #tpu.dot_dimension_numbers<[1], [0], [0], [1], [0, 0, 1, 1], [], []>} : vector<16x32xf32>, vector<32x128xf32>, vector<16x128xf32> -> vector<16x128xf32>
    %c0_3 = arith.constant 0 : index
    %c0_4 = arith.constant 0 : index
    %3 = vector.load %arg3[%c0_3, %c0_4] : memref<1x128xf32, #tpu.memory_space<vmem>>, vector<1x128xf32>
    %4 = vector.broadcast %3 : vector<1x128xf32> to vector<16x128xf32>
    %5 = arith.addf %2, %4 : vector<16x128xf32>
    %6 = math.tanh %5 : vector<16x128xf32>
    %c0_5 = arith.constant 0 : index
    %c0_6 = arith.constant 0 : index
    %7 = vector.load %arg4[%c0_5, %c0_6] : memref<128x128xf32, #tpu.memory_space<vmem>>, vector<128x128xf32>
    %cst_7 = arith.constant dense<0.000000e+00> : vector<16x128xf32>
    %8 = tpu.matmul %6, %7, %cst_7 {dimension_numbers = #tpu.dot_dimension_numbers<[1], [0], [0], [1], [0, 0, 1, 1], [], []>} : vector<16x128xf32>, vector<128x128xf32>, vector<16x128xf32> -> vector<16x128xf32>
    %c0_8 = arith.constant 0 : index
    %c0_9 = arith.constant 0 : index
    %9 = vector.load %arg5[%c0_8, %c0_9] : memref<1x128xf32, #tpu.memory_space<vmem>>, vector<1x128xf32>
    %10 = vector.broadcast %9 : vector<1x128xf32> to vector<16x128xf32>
    %11 = arith.addf %8, %10 : vector<16x128xf32>
    %12 = math.tanh %11 : vector<16x128xf32>
    %c0_10 = arith.constant 0 : index
    %c0_11 = arith.constant 0 : index
    %13 = vector.load %arg6[%c0_10, %c0_11] : memref<128x128xf32, #tpu.memory_space<vmem>>, vector<128x128xf32>
    %cst_12 = arith.constant dense<0.000000e+00> : vector<16x128xf32>
    %14 = tpu.matmul %12, %13, %cst_12 {dimension_numbers = #tpu.dot_dimension_numbers<[1], [0], [0], [1], [0, 0, 1, 1], [], []>} : vector<16x128xf32>, vector<128x128xf32>, vector<16x128xf32> -> vector<16x128xf32>
    %c0_13 = arith.constant 0 : index
    %c0_14 = arith.constant 0 : index
    %15 = vector.load %arg7[%c0_13, %c0_14] : memref<1x128xf32, #tpu.memory_space<vmem>>, vector<1x128xf32>
    %16 = vector.broadcast %15 : vector<1x128xf32> to vector<16x128xf32>
    %17 = arith.addf %14, %16 : vector<16x128xf32>
    %c0_15 = arith.constant 0 : index
    %c0_16 = arith.constant 0 : index
    %18 = vector.load %arg8[%c0_15, %c0_16] : memref<16x128xf32, #tpu.memory_space<vmem>>, vector<16x128xf32>
    tpu.vector_store %arg8[%c0_15, %c0_16], %17 {strides = array<i32>} : memref<16x128xf32, #tpu.memory_space<vmem>>, vector<16x128xf32>,
    return
  }
  func.func @transform_0(%arg0: i32) -> (i32, i32) {
    %c0_i32 = arith.constant 0 : i32
    %c0_i32_0 = arith.constant 0 : i32
    return %arg0, %c0_i32 : i32, i32
  }
  func.func @transform_1(%arg0: i32) -> (i32, i32) {
    %c0_i32 = arith.constant 0 : i32
    %c0_i32_0 = arith.constant 0 : i32
    %c0_i32_1 = arith.constant 0 : i32
    return %c0_i32, %c0_i32_0 : i32, i32
  }
  func.func @transform_2(%arg0: i32) -> (i32, i32) {
    %c0_i32 = arith.constant 0 : i32
    %c0_i32_0 = arith.constant 0 : i32
    %c0_i32_1 = arith.constant 0 : i32
    return %c0_i32, %c0_i32_0 : i32, i32
  }
  func.func @transform_3(%arg0: i32) -> (i32, i32) {
    %c0_i32 = arith.constant 0 : i32
    %c0_i32_0 = arith.constant 0 : i32
    %c0_i32_1 = arith.constant 0 : i32
    return %c0_i32, %c0_i32_0 : i32, i32
  }
  func.func @transform_4(%arg0: i32) -> (i32, i32) {
    %c0_i32 = arith.constant 0 : i32
    %c0_i32_0 = arith.constant 0 : i32
    %c0_i32_1 = arith.constant 0 : i32
    return %c0_i32, %c0_i32_0 : i32, i32
  }
  func.func @transform_5(%arg0: i32) -> (i32, i32) {
    %c0_i32 = arith.constant 0 : i32
    %c0_i32_0 = arith.constant 0 : i32
    %c0_i32_1 = arith.constant 0 : i32
    return %c0_i32, %c0_i32_0 : i32, i32
  }
  func.func @transform_6(%arg0: i32) -> (i32, i32) {
    %c0_i32 = arith.constant 0 : i32
    %c0_i32_0 = arith.constant 0 : i32
    %c0_i32_1 = arith.constant 0 : i32
    return %c0_i32, %c0_i32_0 : i32, i32
  }
  func.func @transform_7(%arg0: i32) -> (i32, i32) {
    %c0_i32 = arith.constant 0 : i32
    %c0_i32_0 = arith.constant 0 : i32
    return %arg0, %c0_i32 : i32, i32
  }
}

</mosaic_0001>

<llo_original>
// kernel: causal_q_critic_forward.1
$region0: #{causal_q_critic_forward.1}
  #allocation0 [shape = 'u32[]', space=smem, size = 0x4, offset = 0x4, fixed_abs, tag = 'smem constant byte address 0x4 - core index']
  #allocation1 [shape = 'u32[144,128]{1,0:T(1,128)}', space=vmem, size = 0x12000, scoped, tag = 'internal scratch']
  %s0 = inlined_call_operand.hbm [shape: f32[16,32], index: 0, kind: input, shape index: {}]
  %s1 = inlined_call_operand.hbm [shape: f32[32,128], index: 1, kind: input, shape index: {}]
  %s2 = inlined_call_operand.vmem [shape: f32[1,128], index: 2, kind: input, shape index: {}]
  %s3 = inlined_call_operand.hbm [shape: f32[128,128], index: 3, kind: input, shape index: {}]
  %s4 = inlined_call_operand.vmem [shape: f32[1,128], index: 4, kind: input, shape index: {}]
  %s5 = inlined_call_operand.hbm [shape: f32[128,128], index: 5, kind: input, shape index: {}]
  %s6 = inlined_call_operand.vmem [shape: f32[1,128], index: 6, kind: input, shape index: {}]
  %s7 = inlined_call_operand.vmem [shape: f32[16,128], index: 7, kind: output, shape index: {}]
  %s8 = sld [smem:[#allocation0]]
  $region54: #{causal_q_critic_forward.1} parent=0
    _
  %s10 = ssub.s32 1, %s8
  %s11 = scalar_select 0, %s10, %s8
  $region1: #{causal_q_critic_forward.1} parent=0
    #allocation2 [shape = 'u8[8192]{0}', space=vmem, size = 0x2000, scoped, tag = 'input window, operand 0, single buffered']
    #allocation3 [shape = 's32[1]{0}', space=sflag, size = 0x4, scoped, tag = 'scoped memory for causal_q_critic_forward.1']
    #allocation4 [shape = 'u8[16384]{0}', space=vmem, size = 0x4000, scoped, tag = 'input window, operand 1, single buffered']
    #allocation5 [shape = 's32[1]{0}', space=sflag, size = 0x4, scoped, tag = 'scoped memory for causal_q_critic_forward.1']
    #allocation6 [shape = 'u8[65536]{0}', space=vmem, size = 0x10000, scoped, tag = 'input window, operand 3, single buffered']
    #allocation7 [shape = 'u8[65536]{0}', space=vmem, size = 0x10000, scoped, tag = 'input window, operand 5, single buffered']
    #allocation8 [shape = 's32[1]{0}', space=sflag, size = 0x4, scoped, tag = 'scoped memory for causal_q_critic_forward.1']
    %12 = vsyncpa [#allocation3], 0
    %13 = vsyncpa [#allocation5], 0
    %14 = vsyncpa [#allocation8], 0
    // Predicated region
    $region2: #{causal_q_critic_forward.1} parent=1 // pred_check
      _
    $region3: #{causal_q_critic_forward.1} parent=1 // pred_check_branch
      %16 = sbr.rel (0) target = $region5
    $region4: #{causal_q_critic_forward.1} parent=1 // pred_region
      %s18 = ssub.s32 256, 256
      %19 = vsyncadd [#allocation3], %s18
      %s20 = sshll.u32 [#allocation2], 4
      %s21 = int_to_ptr.vmem [resolvable:$true] %s20
      %26 = dma.hbm_to_vmem [thread:$0]  %s0, 256, %s21, [#allocation3], 128, 128, 8
    $region5: #{causal_q_critic_forward.1} parent=1 // pred_fallthru
      _
    // Predicated region
    $region6: #{causal_q_critic_forward.1} parent=1 // pred_check
      _
    $region7: #{causal_q_critic_forward.1} parent=1 // pred_check_branch
      %28 = sbr.rel (0) target = $region9
    $region8: #{causal_q_critic_forward.1} parent=1 // pred_region
      %s30 = ssub.s32 512, 512
      %31 = vsyncadd [#allocation5], %s30
      %s32 = sshll.u32 [#allocation4], 4
      %s33 = int_to_ptr.vmem [resolvable:$true] %s32
      %38 = dma.hbm_to_vmem [thread:$0]  %s1, 512, %s33, [#allocation5], 128, 128, 8
    $region9: #{causal_q_critic_forward.1} parent=1 // pred_fallthru
      _
    // Predicated region
    $region10: #{causal_q_critic_forward.1} parent=1 // pred_check
      _
    $region11: #{causal_q_critic_forward.1} parent=1 // pred_check_branch
      %40 = sbr.rel (0) target = $region13
    $region12: #{causal_q_critic_forward.1} parent=1 // pred_region
      _
    $region13: #{causal_q_critic_forward.1} parent=1 // pred_fallthru
      _
    // Predicated region
    $region14: #{causal_q_critic_forward.1} parent=1 // pred_check
      _
    $region15: #{causal_q_critic_forward.1} parent=1 // pred_check_branch
      %42 = sbr.rel (0) target = $region17
    $region16: #{causal_q_critic_forward.1} parent=1 // pred_region
      %s44 = ssub.s32 2048, 2048
      %45 = vsyncadd [#allocation5], %s44
      %s46 = sshll.u32 [#allocation6], 4
      %s47 = int_to_ptr.vmem [resolvable:$true] %s46
      %52 = dma.hbm_to_vmem [thread:$0]  %s3, 2048, %s47, [#allocation5], 128, 128, 8
    $region17: #{causal_q_critic_forward.1} parent=1 // pred_fallthru
      _
    // Predicated region
    $region18: #{causal_q_critic_forward.1} parent=1 // pred_check
      _
    $region19: #{causal_q_critic_forward.1} parent=1 // pred_check_branch
      %54 = sbr.rel (0) target = $region21
    $region20: #{causal_q_critic_forward.1} parent=1 // pred_region
      _
    $region21: #{causal_q_critic_forward.1} parent=1 // pred_fallthru
      _
    // Predicated region
    $region22: #{causal_q_critic_forward.1} parent=1 // pred_check
      _
    $region23: #{causal_q_critic_forward.1} parent=1 // pred_check_branch
      %56 = sbr.rel (0) target = $region25
    $region24: #{causal_q_critic_forward.1} parent=1 // pred_region
      %s58 = ssub.s32 2048, 2048
      %59 = vsyncadd [#allocation8], %s58
      %s60 = sshll.u32 [#allocation7], 4
      %s61 = int_to_ptr.vmem [resolvable:$true] %s60
      %66 = dma.hbm_to_vmem [thread:$0]  %s5, 2048, %s61, [#allocation8], 128, 128, 8
    $region25: #{causal_q_critic_forward.1} parent=1 // pred_fallthru
      _
    // Predicated region
    $region26: #{causal_q_critic_forward.1} parent=1 // pred_check
      _
    $region27: #{causal_q_critic_forward.1} parent=1 // pred_check_branch
      %68 = sbr.rel (0) target = $region29
    $region28: #{causal_q_critic_forward.1} parent=1 // pred_region
      _
    $region29: #{causal_q_critic_forward.1} parent=1 // pred_fallthru
      _
    // Predicated region
    $region30: #{causal_q_critic_forward.1} parent=1 // pred_check
      _
    $region31: #{causal_q_critic_forward.1} parent=1 // pred_check_branch
      %70 = sbr.rel (0) target = $region33
    $region32: #{causal_q_critic_forward.1} parent=1 // pred_region
      %71 = dma.done [#allocation3], 256
    $region33: #{causal_q_critic_forward.1} parent=1 // pred_fallthru
      _
    // Predicated region
    $region34: #{causal_q_critic_forward.1} parent=1 // pred_check
      _
    $region35: #{causal_q_critic_forward.1} parent=1 // pred_check_branch
      %73 = sbr.rel (0) target = $region37
    $region36: #{causal_q_critic_forward.1} parent=1 // pred_region
      %74 = dma.done [#allocation5], 512
    $region37: #{causal_q_critic_forward.1} parent=1 // pred_fallthru
      _
    // Predicated region
    $region38: #{causal_q_critic_forward.1} parent=1 // pred_check
      _
    $region39: #{causal_q_critic_forward.1} parent=1 // pred_check_branch
      %76 = sbr.rel (0) target = $region41
    $region40: #{causal_q_critic_forward.1} parent=1 // pred_region
      %77 = dma.done [#allocation5], 2048
    $region41: #{causal_q_critic_forward.1} parent=1 // pred_fallthru
      _
    // Predicated region
    $region42: #{causal_q_critic_forward.1} parent=1 // pred_check
      _
    $region43: #{causal_q_critic_forward.1} parent=1 // pred_check_branch
      %79 = sbr.rel (0) target = $region45
    $region44: #{causal_q_critic_forward.1} parent=1 // pred_region
      %80 = dma.done [#allocation8], 2048
    $region45: #{causal_q_critic_forward.1} parent=1 // pred_fallthru
      _
    %v81 = vld [vmem:[#allocation2] sm:$0xff]
    %v82 = vld [vmem:[#allocation2 + $0x8] sm:$0xff]
    %v83 = vld [vmem:[#allocation4] sm:$0xff]
    %v84 = vld [vmem:[#allocation4 + $0x8] sm:$0xff]
    %v85 = vld [vmem:[#allocation4 + $0x10] sm:$0xff]
    %v86 = vld [vmem:[#allocation4 + $0x18] sm:$0xff]
    %v87 = vld [vmem:[%s2] sm:$0x1]
    %v89 = vlaneseq
    %v90 = vshrl.u32 %v89, 7
    %v91 = vsub.s32 0, %v90
    %v92 = vrot.slane %v87, %v91
    %vm94 = vcmask 261120
    %v96 = vsel %vm94, %v81, 0
    %v99 = vsel %vm94, %v82, 0
    %101 = vmatprep.subr.mxu0 0.0
    %102 = vmatpush1.msra.mxu0 0.0
    %103 = vmatprep.subr.mxu0 0.0
    %104 = vmatpush1.msra.mxu0 0.0
    %105 = vmatprep.subr.mxu0 0.0
    %106 = vmatpush1.msra.mxu0 0.0
    %107 = vmatprep.subr.mxu0 0.0
    %108 = vmatpush1.msra.mxu0 0.0
    %109 = vmatprep.subr.mxu0 0.0
    %110 = vmatpush1.msra.mxu0 0.0
    %111 = vmatprep.subr.mxu0 0.0
    %112 = vmatpush1.msra.mxu0 0.0
    %113 = vmatprep.subr.mxu0 0.0
    %114 = vmatpush1.msra.mxu0 0.0
    %115 = vmatprep.subr.mxu0 0.0
    %116 = vmatpush1.msra.mxu0 0.0
    %117 = vmatprep.subr.mxu0 0.0
    %118 = vmatpush1.msra.mxu0 0.0
    %119 = vmatprep.subr.mxu0 0.0
    %120 = vmatpush1.msra.mxu0 0.0
    %121 = vmatprep.subr.mxu0 0.0
    %122 = vmatpush1.msra.mxu0 0.0
    %123 = vmatprep.subr.mxu0 0.0
    %124 = vmatpush1.msra.mxu0 0.0
    %125 = vmatprep.subr.mxu0 0.0
    %126 = vmatpush1.msra.mxu0 %v86
    %127 = vmatprep.subr.mxu0 0.0
    %128 = vmatpush1.msra.mxu0 %v85
    %129 = vmatprep.subr.mxu0 0.0
    %130 = vmatpush1.msra.mxu0 %v84
    %131 = vmatprep.subr.mxu0 0.0
    %132 = vmatpush1.msra.mxu0 %v83
    %133 = vmatprep.subr.mxu0 0.0
    %134 = vmatpush2.msra.mxu0 0.0
    %135 = vmatprep.subr.mxu0 0.0
    %136 = vmatpush2.msra.mxu0 0.0
    %137 = vmatprep.subr.mxu0 0.0
    %138 = vmatpush2.msra.mxu0 0.0
    %139 = vmatprep.subr.mxu0 0.0
    %140 = vmatpush2.msra.mxu0 0.0
    %141 = vmatprep.subr.mxu0 0.0
    %142 = vmatpush2.msra.mxu0 0.0
    %143 = vmatprep.subr.mxu0 0.0
    %144 = vmatpush2.msra.mxu0 0.0
    %145 = vmatprep.subr.mxu0 0.0
    %146 = vmatpush2.msra.mxu0 0.0
    %147 = vmatprep.subr.mxu0 0.0
    %148 = vmatpush2.msra.mxu0 0.0
    %149 = vmatprep.subr.mxu0 0.0
    %150 = vmatpush2.msra.mxu0 0.0
    %151 = vmatprep.subr.mxu0 0.0
    %152 = vmatpush2.msra.mxu0 0.0
    %153 = vmatprep.subr.mxu0 0.0
    %154 = vmatpush2.msra.mxu0 0.0
    %155 = vmatprep.subr.mxu0 0.0
    %156 = vmatpush2.msra.mxu0 0.0
    %157 = vmatprep.subr.mxu0 0.0
    %158 = vmatpush2.msra.mxu0 0.0
    %159 = vmatprep.subr.mxu0 0.0
    %160 = vmatpush2.msra.mxu0 0.0
    %161 = vmatprep.subr.mxu0 0.0
    %162 = vmatpush2.msra.mxu0 0.0
    %163 = vmatprep.subr.mxu0 0.0
    %164 = vmatpush2.msra.mxu0 0.0
    %165 = vmatprep.mubr.f32.mxu0 0.0
    %166 = vmatmul.mubr.f32.gmra.mxu0 %v96
    %v167 = vpop.f32.mrf.mxu0
    %v168 = vadd.f32 %v92, %v167
    %v169 = vpop.f32.mrf.mxu0
    %170 = vmatprep.mubr.f32.mxu0 0.0
    %171 = vmatmul.mubr.f32.gmra.mxu0 %v99
    %v172 = vpop.f32.mrf.mxu0
    %v173 = vadd.f32 %v92, %v172
    %v174 = vpop.f32.mrf.mxu0
    %175 = vdwg.mxu0
    %v176 = vtanh.pop %v168
    %v177 = vtanh.pop %v173
    %v178 = vld [vmem:[#allocation6] sm:$0xff]
    %v179 = vld [vmem:[#allocation6 + $0x8] sm:$0xff]
    %v180 = vld [vmem:[#allocation6 + $0x10] sm:$0xff]
    %v181 = vld [vmem:[#allocation6 + $0x18] sm:$0xff]
    %v182 = vld [vmem:[#allocation6 + $0x20] sm:$0xff]
    %v183 = vld [vmem:[#allocation6 + $0x28] sm:$0xff]
    %v184 = vld [vmem:[#allocation6 + $0x30] sm:$0xff]
    %v185 = vld [vmem:[#allocation6 + $0x38] sm:$0xff]
    %v186 = vld [vmem:[#allocation6 + $0x40] sm:$0xff]
    %v187 = vld [vmem:[#allocation6 + $0x48] sm:$0xff]
    %v188 = vld [vmem:[#allocation6 + $0x50] sm:$0xff]
    %v189 = vld [vmem:[#allocation6 + $0x58] sm:$0xff]
    %v190 = vld [vmem:[#allocation6 + $0x60] sm:$0xff]
    %v191 = vld [vmem:[#allocation6 + $0x68] sm:$0xff]
    %v192 = vld [vmem:[#allocation6 + $0x70] sm:$0xff]
    %v193 = vld [vmem:[#allocation6 + $0x78] sm:$0xff]
    %v194 = vld [vmem:[%s4] sm:$0x1]
    %v196 = vlaneseq
    %v197 = vshrl.u32 %v196, 7
    %v198 = vsub.s32 0, %v197
    %v199 = vrot.slane %v194, %v198
    %201 = vmatprep.subr.mxu0 0.0
    %202 = vmatpush1.msra.mxu0 %v193
    %203 = vmatprep.subr.mxu0 0.0
    %204 = vmatpush1.msra.mxu0 %v192
    %205 = vmatprep.subr.mxu0 0.0
    %206 = vmatpush1.msra.mxu0 %v191
    %207 = vmatprep.subr.mxu0 0.0
    %208 = vmatpush1.msra.mxu0 %v190
    %209 = vmatprep.subr.mxu0 0.0
    %210 = vmatpush1.msra.mxu0 %v189
    %211 = vmatprep.subr.mxu0 0.0
    %212 = vmatpush1.msra.mxu0 %v188
    %213 = vmatprep.subr.mxu0 0.0
    %214 = vmatpush1.msra.mxu0 %v187
    %215 = vmatprep.subr.mxu0 0.0
    %216 = vmatpush1.msra.mxu0 %v186
    %217 = vmatprep.subr.mxu0 0.0
    %218 = vmatpush1.msra.mxu0 %v185
    %219 = vmatprep.subr.mxu0 0.0
    %220 = vmatpush1.msra.mxu0 %v184
    %221 = vmatprep.subr.mxu0 0.0
    %222 = vmatpush1.msra.mxu0 %v183
    %223 = vmatprep.subr.mxu0 0.0
    %224 = vmatpush1.msra.mxu0 %v182
    %225 = vmatprep.subr.mxu0 0.0
    %226 = vmatpush1.msra.mxu0 %v181
    %227 = vmatprep.subr.mxu0 0.0
    %228 = vmatpush1.msra.mxu0 %v180
    %229 = vmatprep.subr.mxu0 0.0
    %230 = vmatpush1.msra.mxu0 %v179
    %231 = vmatprep.subr.mxu0 0.0
    %232 = vmatpush1.msra.mxu0 %v178
    %233 = vmatprep.subr.mxu0 0.0
    %234 = vmatpush2.msra.mxu0 0.0
    %235 = vmatprep.subr.mxu0 0.0
    %236 = vmatpush2.msra.mxu0 0.0
    %237 = vmatprep.subr.mxu0 0.0
    %238 = vmatpush2.msra.mxu0 0.0
    %239 = vmatprep.subr.mxu0 0.0
    %240 = vmatpush2.msra.mxu0 0.0
    %241 = vmatprep.subr.mxu0 0.0
    %242 = vmatpush2.msra.mxu0 0.0
    %243 = vmatprep.subr.mxu0 0.0
    %244 = vmatpush2.msra.mxu0 0.0
    %245 = vmatprep.subr.mxu0 0.0
    %246 = vmatpush2.msra.mxu0 0.0
    %247 = vmatprep.subr.mxu0 0.0
    %248 = vmatpush2.msra.mxu0 0.0
    %249 = vmatprep.subr.mxu0 0.0
    %250 = vmatpush2.msra.mxu0 0.0
    %251 = vmatprep.subr.mxu0 0.0
    %252 = vmatpush2.msra.mxu0 0.0
    %253 = vmatprep.subr.mxu0 0.0
    %254 = vmatpush2.msra.mxu0 0.0
    %255 = vmatprep.subr.mxu0 0.0
    %256 = vmatpush2.msra.mxu0 0.0
    %257 = vmatprep.subr.mxu0 0.0
    %258 = vmatpush2.msra.mxu0 0.0
    %259 = vmatprep.subr.mxu0 0.0
    %260 = vmatpush2.msra.mxu0 0.0
    %261 = vmatprep.subr.mxu0 0.0
    %262 = vmatpush2.msra.mxu0 0.0
    %263 = vmatprep.subr.mxu0 0.0
    %264 = vmatpush2.msra.mxu0 0.0
    %265 = vmatprep.mubr.f32.mxu0 0.0
    %266 = vmatmul.mubr.f32.gmra.mxu0 %v176
    %v267 = vpop.f32.mrf.mxu0
    %v268 = vadd.f32 %v199, %v267
    %v269 = vpop.f32.mrf.mxu0
    %270 = vmatprep.mubr.f32.mxu0 0.0
    %271 = vmatmul.mubr.f32.gmra.mxu0 %v177
    %v272 = vpop.f32.mrf.mxu0
    %v273 = vadd.f32 %v199, %v272
    %v274 = vpop.f32.mrf.mxu0
    %275 = vdwg.mxu0
    %v276 = vtanh.pop %v268
    %v277 = vtanh.pop %v273
    %v278 = vld [vmem:[#allocation7] sm:$0xff]
    %v279 = vld [vmem:[#allocation7 + $0x8] sm:$0xff]
    %v280 = vld [vmem:[#allocation7 + $0x10] sm:$0xff]
    %v281 = vld [vmem:[#allocation7 + $0x18] sm:$0xff]
    %v282 = vld [vmem:[#allocation7 + $0x20] sm:$0xff]
    %v283 = vld [vmem:[#allocation7 + $0x28] sm:$0xff]
    %v284 = vld [vmem:[#allocation7 + $0x30] sm:$0xff]
    %v285 = vld [vmem:[#allocation7 + $0x38] sm:$0xff]
    %v286 = vld [vmem:[#allocation7 + $0x40] sm:$0xff]
    %v287 = vld [vmem:[#allocation7 + $0x48] sm:$0xff]
    %v288 = vld [vmem:[#allocation7 + $0x50] sm:$0xff]
    %v289 = vld [vmem:[#allocation7 + $0x58] sm:$0xff]
    %v290 = vld [vmem:[#allocation7 + $0x60] sm:$0xff]
    %v291 = vld [vmem:[#allocation7 + $0x68] sm:$0xff]
    %v292 = vld [vmem:[#allocation7 + $0x70] sm:$0xff]
    %v293 = vld [vmem:[#allocation7 + $0x78] sm:$0xff]
    %v294 = vld [vmem:[%s6] sm:$0x1]
    %v296 = vlaneseq
    %v297 = vshrl.u32 %v296, 7
    %v298 = vsub.s32 0, %v297
    %v299 = vrot.slane %v294, %v298
    %301 = vmatprep.subr.mxu0 0.0
    %302 = vmatpush1.msra.mxu0 %v293
    %303 = vmatprep.subr.mxu0 0.0
    %304 = vmatpush1.msra.mxu0 %v292
    %305 = vmatprep.subr.mxu0 0.0
    %306 = vmatpush1.msra.mxu0 %v291
    %307 = vmatprep.subr.mxu0 0.0
    %308 = vmatpush1.msra.mxu0 %v290
    %309 = vmatprep.subr.mxu0 0.0
    %310 = vmatpush1.msra.mxu0 %v289
    %311 = vmatprep.subr.mxu0 0.0
    %312 = vmatpush1.msra.mxu0 %v288
    %313 = vmatprep.subr.mxu0 0.0
    %314 = vmatpush1.msra.mxu0 %v287
    %315 = vmatprep.subr.mxu0 0.0
    %316 = vmatpush1.msra.mxu0 %v286
    %317 = vmatprep.subr.mxu0 0.0
    %318 = vmatpush1.msra.mxu0 %v285
    %319 = vmatprep.subr.mxu0 0.0
    %320 = vmatpush1.msra.mxu0 %v284
    %321 = vmatprep.subr.mxu0 0.0
    %322 = vmatpush1.msra.mxu0 %v283
    %323 = vmatprep.subr.mxu0 0.0
    %324 = vmatpush1.msra.mxu0 %v282
    %325 = vmatprep.subr.mxu0 0.0
    %326 = vmatpush1.msra.mxu0 %v281
    %327 = vmatprep.subr.mxu0 0.0
    %328 = vmatpush1.msra.mxu0 %v280
    %329 = vmatprep.subr.mxu0 0.0
    %330 = vmatpush1.msra.mxu0 %v279
    %331 = vmatprep.subr.mxu0 0.0
    %332 = vmatpush1.msra.mxu0 %v278
    %333 = vmatprep.subr.mxu0 0.0
    %334 = vmatpush2.msra.mxu0 0.0
    %335 = vmatprep.subr.mxu0 0.0
    %336 = vmatpush2.msra.mxu0 0.0
    %337 = vmatprep.subr.mxu0 0.0
    %338 = vmatpush2.msra.mxu0 0.0
    %339 = vmatprep.subr.mxu0 0.0
    %340 = vmatpush2.msra.mxu0 0.0
    %341 = vmatprep.subr.mxu0 0.0
    %342 = vmatpush2.msra.mxu0 0.0
    %343 = vmatprep.subr.mxu0 0.0
    %344 = vmatpush2.msra.mxu0 0.0
    %345 = vmatprep.subr.mxu0 0.0
    %346 = vmatpush2.msra.mxu0 0.0
    %347 = vmatprep.subr.mxu0 0.0
    %348 = vmatpush2.msra.mxu0 0.0
    %349 = vmatprep.subr.mxu0 0.0
    %350 = vmatpush2.msra.mxu0 0.0
    %351 = vmatprep.subr.mxu0 0.0
    %352 = vmatpush2.msra.mxu0 0.0
    %353 = vmatprep.subr.mxu0 0.0
    %354 = vmatpush2.msra.mxu0 0.0
    %355 = vmatprep.subr.mxu0 0.0
    %356 = vmatpush2.msra.mxu0 0.0
    %357 = vmatprep.subr.mxu0 0.0
    %358 = vmatpush2.msra.mxu0 0.0
    %359 = vmatprep.subr.mxu0 0.0
    %360 = vmatpush2.msra.mxu0 0.0
    %361 = vmatprep.subr.mxu0 0.0
    %362 = vmatpush2.msra.mxu0 0.0
    %363 = vmatprep.subr.mxu0 0.0
    %364 = vmatpush2.msra.mxu0 0.0
    %365 = vmatprep.mubr.f32.mxu0 0.0
    %366 = vmatmul.mubr.f32.gmra.mxu0 %v276
    %v367 = vpop.f32.mrf.mxu0
    %v368 = vadd.f32 %v299, %v367
    %v369 = vpop.f32.mrf.mxu0
    %370 = vmatprep.mubr.f32.mxu0 0.0
    %371 = vmatmul.mubr.f32.gmra.mxu0 %v277
    %v372 = vpop.f32.mrf.mxu0
    %v373 = vadd.f32 %v299, %v372
    %v374 = vpop.f32.mrf.mxu0
    %375 = vdwg.mxu0
    %376 = vst [vmem:[%s7] sm:$0xff] %v368
    %377 = vst [vmem:[%s7 + $0x8] sm:$0xff] %v373
    // Predicated region
    $region46: #{causal_q_critic_forward.1} parent=1 // pred_check
      _
    $region47: #{causal_q_critic_forward.1} parent=1 // pred_check_branch
      %379 = sbr.rel (0) target = $region49
    $region48: #{causal_q_critic_forward.1} parent=1 // pred_region
      _
    $region49: #{causal_q_critic_forward.1} parent=1 // pred_fallthru
      _
    // Predicated region
    $region50: #{causal_q_critic_forward.1} parent=1 // pred_check
      _
    $region51: #{causal_q_critic_forward.1} parent=1 // pred_check_branch
      %381 = sbr.rel (0) target = $region53
    $region52: #{causal_q_critic_forward.1} parent=1 // pred_region
      _
    $region53: #{causal_q_critic_forward.1} parent=1 // pred_fallthru
      _
    %382 = vsyncpa [#allocation3], 1
    %383 = vsyncpa [#allocation5], 1
    %384 = vsyncpa [#allocation8], 1

</llo_original>
